<compile_context>
chip_gen: v7x
topology: tpu7x:2x2x1
jax: 0.10.0
libtpu: 0.0.40
codegen_flags: <defaults>
</compile_context>

<pallas_src>
import functools
import numpy as np

import jax
import jax.numpy as jnp
from jax import lax
from jax.experimental import pallas as pl
from jax.experimental.pallas import tpu as pltpu


# -----------------------------------------------------------------------------
# Kernel 1: compute_loss_list — grid over row blocks of the batch ("parallel").
# Similarity is computed transposed, (m, TI), so reductions over the bank axis
# (sublanes) produce a lane-dense (1, TI) output row directly.
# -----------------------------------------------------------------------------
def _loss_kernel(xc_ref, xr_ref, tc_ref, tr_ref, out_ref, *, margin):
    ib = pl.program_id(0)
    m = xr_ref.shape[0]
    ti = out_ref.shape[1]

    # sim_t[j, i] = <inputs_row[j], inputs_col[ib*TI + i]>   (MXU, bf16 -> f32)
    sim = lax.dot_general(xr_ref[...], xc_ref[...],
                          dimension_numbers=(((1,), (1,)), ((), ())),
                          preferred_element_type=jnp.float32)        # (m, TI)

    tc = tc_ref[...]                                    # (1, TI) int32 (lanes)
    tr = tr_ref[...]                                    # (m, 1)  int32 (sublanes)
    pos0 = tr == tc                                     # (m, TI)
    bank_idx = lax.broadcasted_iota(jnp.int32, (m, ti), 0)
    anchor_idx = lax.broadcasted_iota(jnp.int32, (m, ti), 1) + ib * ti
    # NOTE: assumes bank column j < n is the same physical sample as batch row j
    # (memory-bank prefix ordering), matching pos_mask[:, :n] *= ~eye in the ref.
    diag = bank_idx == anchor_idx
    pos = jnp.logical_and(pos0, jnp.logical_not(diag))
    neg = jnp.logical_not(pos0)

    NEG = jnp.float32(-1e30)
    max_neg = jnp.max(jnp.where(neg, sim, NEG), axis=0, keepdims=True)  # neg_pair_[-1]
    max_pos = jnp.max(jnp.where(pos, sim, NEG), axis=0, keepdims=True)  # pos_pair_[-1]

    # positives with sim < max_neg + margin  ->  sum(1 - sim)
    pos_sel = jnp.logical_and(pos, sim < max_neg + margin)
    pos_loss = jnp.sum(jnp.where(pos_sel, 1.0 - sim, 0.0), axis=0, keepdims=True)

    # negatives with sim > max(0.6, max_pos) - margin  ->  sum(sim)
    thr = jnp.maximum(jnp.float32(0.6), max_pos) - margin
    neg_sel = jnp.logical_and(neg, sim > thr)
    neg_loss = jnp.sum(jnp.where(neg_sel, sim, 0.0), axis=0, keepdims=True)

    pos_count = jnp.sum(jnp.where(pos, 1.0, 0.0), axis=0, keepdims=True)
    out_ref[...] = jnp.where(pos_count > 0, pos_loss + neg_loss, 0.0)


def compute_loss_list_pallas(inputs_col, targets_col, inputs_row, targets_row,
                             margin=0.1):
    n, dim = inputs_col.shape
    m = inputs_row.shape[0]
    ti = 128 if (n % 128 == 0) else n          # row-block on the anchor axis

    xc = inputs_col.astype(jnp.bfloat16)       # feed the MXU bf16
    xr = inputs_row.astype(jnp.bfloat16)
    tc2 = targets_col.astype(jnp.int32).reshape(1, n)
    tr2 = targets_row.astype(jnp.int32).reshape(m, 1)

    out = pl.pallas_call(
        functools.partial(_loss_kernel, margin=float(margin)),
        out_shape=jax.ShapeDtypeStruct((1, n), jnp.float32),
        grid_spec=pltpu.PrefetchScalarGridSpec(
            num_scalar_prefetch=0,
            grid=(n // ti,),
            in_specs=[pl.BlockSpec((ti, dim), lambda i: (i, 0)),   # anchor rows
                      pl.BlockSpec((m, dim), lambda i: (0, 0)),    # resident bank
                      pl.BlockSpec((1, ti), lambda i: (0, i)),     # anchor labels
                      pl.BlockSpec((m, 1), lambda i: (0, 0))],     # bank labels
            out_specs=pl.BlockSpec((1, ti), lambda i: (0, i))),
        compiler_params=pltpu.CompilerParams(dimension_semantics=("parallel",)),
    )(xc, xr, tc2, tr2)
    return out[0, :]


# -----------------------------------------------------------------------------
# Kernel 2: FastAP reward.  Grid = (row blocks "parallel", column blocks
# "arbitrary").  Per step: (TJ, TI) similarity block on the MXU, then a pl.loop
# over the TJ columns accumulates (L, TI) histogram state (bins on sublanes,
# anchors on lanes).  The cumulative histogram uses the closed-form ramp
# (== cumsum of the triangular soft bins since bin spacing == delta).
# -----------------------------------------------------------------------------
def _fastap_kernel(xr_ref, xc_ref, labr_ref, labc_ref, zd_ref, out_ref,
                   dscr, pscr, ascr, hpos_ref, Hpos_ref, Hall_ref, npos_ref,
                   *, num_bins, inv_delta):
    ib = pl.program_id(0)
    jb = pl.program_id(1)
    ti = out_ref.shape[1]
    tj = xc_ref.shape[0]

    @pl.when(jb == 0)
    def _():
        hpos_ref[...] = jnp.zeros_like(hpos_ref)
        Hpos_ref[...] = jnp.zeros_like(Hpos_ref)
        Hall_ref[...] = jnp.zeros_like(Hall_ref)
        npos_ref[...] = jnp.zeros_like(npos_ref)

    # sim[j, i] = <x[jb*TJ + j], x[ib*TI + i]>     (MXU, bf16 -> f32)
    sim = lax.dot_general(xc_ref[...], xr_ref[...],
                          dimension_numbers=(((1,), (1,)), ((), ())),
                          preferred_element_type=jnp.float32)       # (TJ, TI)
    # squared L2 distance (unit-norm embeddings), pre-scaled by 1/delta
    dblk = jnp.clip((2.0 - 2.0 * sim) * inv_delta, 0.0, float(num_bins))

    labr = labr_ref[...]                         # (1, TI)
    labc = labc_ref[...]                         # (TJ, 1)
    same = labc == labr                          # (TJ, TI)
    gi = lax.broadcasted_iota(jnp.int32, (tj, ti), 1) + ib * ti   # anchor index
    gj = lax.broadcasted_iota(jnp.int32, (tj, ti), 0) + jb * tj   # other index
    is_self = gi == gj
    posb = jnp.where(jnp.logical_and(same, jnp.logical_not(is_self)), 1.0, 0.0)
    allb = jnp.where(is_self, 0.0, 1.0)          # pos + neg == 1 - self

    dscr[...] = dblk
    pscr[...] = posb
    ascr[...] = allb
    npos_ref[...] += jnp.sum(posb, axis=0, keepdims=True)

    zd = zd_ref[...]                             # (L, 1) == z / delta (exact ints)

    @pl.loop(0, tj)
    def _(jj):
        dj = dscr[pl.ds(jj, 1), :]               # (1, TI) scaled distances
        pj = pscr[pl.ds(jj, 1), :]               # (1, TI) positive mask
        aj = ascr[pl.ds(jj, 1), :]               # (1, TI) 1 - self mask
        x = zd - dj                              # (L, TI)
        up = jnp.clip(x + 1.0, 0.0, 1.0)         # ramp  == cumsum of soft bins
        dn = jnp.clip(1.0 - x, 0.0, 1.0)         # pulse == up + dn - 1
        pr = pj * up
        Hpos_ref[...] += pr
        Hall_ref[...] += aj * up
        hpos_ref[...] += pr + pj * (dn - 1.0)

    @pl.when(jb == pl.num_programs(1) - 1)
    def _():
        Hall = Hall_ref[...]
        has = Hall > 0.0
        inv_hall = pl.reciprocal(jnp.where(has, Hall, 1.0), approx=True)
        terms = jnp.where(has, hpos_ref[...] * Hpos_ref[...] * inv_hall, 0.0)
        ap = jnp.sum(terms, axis=0, keepdims=True)            # (1, TI)
        npos = npos_ref[...]
        haspos = npos > 0.0
        inv_np = pl.reciprocal(jnp.where(haspos, npos, 1.0), approx=True)
        out_ref[...] = jnp.where(haspos, ap * inv_np, 0.0)


def fastap_reward_pallas(inputs_col, labels, num_bins=1600):
    n, dim = inputs_col.shape
    L = num_bins + 1
    delta = 4.0 / num_bins

    ti = 128 if (n % 128 == 0) else n            # anchor block (parallel, lanes)
    if n % 32 == 0:
        tj = 32                                  # "other sample" column block
    elif n % 8 == 0:
        tj = 8
    else:
        tj = n

    x16 = inputs_col.astype(jnp.bfloat16)
    lab_row = labels.astype(jnp.int32).reshape(1, n)
    lab_col = labels.astype(jnp.int32).reshape(n, 1)
    zd = jnp.arange(L, dtype=jnp.float32).reshape(L, 1)   # z / delta

    out = pl.pallas_call(
        functools.partial(_fastap_kernel, num_bins=num_bins,
                          inv_delta=float(1.0 / delta)),
        out_shape=jax.ShapeDtypeStruct((1, n), jnp.float32),
        grid_spec=pltpu.PrefetchScalarGridSpec(
            num_scalar_prefetch=0,
            grid=(n // ti, n // tj),
            in_specs=[pl.BlockSpec((ti, dim), lambda ib, jb: (ib, 0)),  # anchors
                      pl.BlockSpec((tj, dim), lambda ib, jb: (jb, 0)),  # others
                      pl.BlockSpec((1, ti), lambda ib, jb: (0, ib)),    # labels (lanes)
                      pl.BlockSpec((tj, 1), lambda ib, jb: (jb, 0)),    # labels (sublanes)
                      pl.BlockSpec((L, 1), lambda ib, jb: (0, 0))],     # z/delta
            out_specs=pl.BlockSpec((1, ti), lambda ib, jb: (0, ib)),
            scratch_shapes=[pltpu.VMEM((tj, ti), jnp.float32),   # scaled distances
                            pltpu.VMEM((tj, ti), jnp.float32),   # pos mask
                            pltpu.VMEM((tj, ti), jnp.float32),   # 1 - self mask
                            pltpu.VMEM((L, ti), jnp.float32),    # h_pos
                            pltpu.VMEM((L, ti), jnp.float32),    # H_pos (cum)
                            pltpu.VMEM((L, ti), jnp.float32),    # H_all (cum)
                            pltpu.VMEM((1, ti), jnp.float32)]),  # N_pos
        compiler_params=pltpu.CompilerParams(
            dimension_semantics=("parallel", "arbitrary")),
    )(x16, x16, lab_row, lab_col, zd)
    return out[0, :]


# -----------------------------------------------------------------------------
# Forward pass of RewardTripletLoss
# -----------------------------------------------------------------------------
def reward_triplet_loss(inputs_col, targets_col, inputs_row, targets_row,
                        reward_labels, reward_baseline=None,
                        margin=0.1, num_bins=1600):
    # reward_baseline is accepted for API parity with the PyTorch module but is
    # unused by its forward pass; the logger kwarg side-effect is logging only.
    n = inputs_col.shape[0]
    loss_vec = compute_loss_list_pallas(inputs_col, targets_col,
                                        inputs_row, targets_row, margin)   # (n,)
    rewards = fastap_reward_pallas(inputs_col, reward_labels, num_bins)    # (n,)
    return jnp.sum(loss_vec * (1.0 - rewards)) / n


# -----------------------------------------------------------------------------
# Pure-numpy reference (mirrors the PyTorch forward semantics)
# -----------------------------------------------------------------------------
def _reference_loss(inputs_col, targets_col, inputs_row, targets_row,
                    reward_labels, margin=0.1, num_bins=1600):
    xc = np.asarray(inputs_col, dtype=np.float64)
    xr = np.asarray(inputs_row, dtype=np.float64)
    tc = np.asarray(targets_col)
    tr = np.asarray(targets_row)
    rl = np.asarray(reward_labels)
    n = xc.shape[0]
    sim = xc @ xr.T
    pos0 = tc[:, None] == tr[None, :]
    neg = ~pos0
    pos = pos0.copy()
    pos[np.arange(n), np.arange(n)] = False
    losses = []
    for i in range(n):
        pp = np.sort(sim[i, pos[i]])
        if pp.size > 0:
            nn_ = np.sort(sim[i, neg[i]])
            sel_p = pp[pp < nn_[-1] + margin]
            sel_n = nn_[nn_ > max(0.6, pp[-1]) - margin]
            losses.append(np.sum(1.0 - sel_p) + (np.sum(sel_n) if sel_n.size >= 1 else 0.0))
        else:
            losses.append(0.0)
    losses = np.array(losses)
    # FastAP reward
    d = np.clip(2.0 - 2.0 * (xc @ xc.T), 0.0, 4.0)
    L = num_bins + 1
    delta = 4.0 / num_bins
    z = np.arange(L) * delta
    same = rl[:, None] == rl[None, :]
    Ipos = same.copy()
    Ipos[np.arange(n), np.arange(n)] = False
    Ineg = ~same
    rewards = []
    for i in range(n):
        pulse = np.maximum(0.0, 1.0 - np.abs(d[i][:, None] - z[None, :]) / delta)
        hp = (pulse * Ipos[i][:, None]).sum(0)
        hn = (pulse * Ineg[i][:, None]).sum(0)
        Hp = np.cumsum(hp)
        Ha = Hp + np.cumsum(hn)
        terms = np.where(Ha > 0, hp * Hp / np.where(Ha > 0, Ha, 1.0), 0.0)
        npos = Ipos[i].sum()
        rewards.append(terms.sum() / npos if npos > 0 else 0.0)
    rewards = np.array(rewards)
    return float(np.sum(losses * (1.0 - rewards)) / n)


if __name__ == "__main__":
    n, m, dim = 8, 16, 32
    key = jax.random.PRNGKey(0)
    k1, k2 = jax.random.split(key)

    def l2norm(x):
        return x / jnp.linalg.norm(x, axis=1, keepdims=True)

    def bf16_round(x):
        # make inputs bf16-representable so the bf16 MXU path matches the f64
        # reference tightly (the kernels cast to bf16 internally anyway)
        return x.astype(jnp.bfloat16).astype(jnp.float32)

    inputs_col = bf16_round(l2norm(jax.random.normal(k1, (n, dim), dtype=jnp.float32)))
    extra = bf16_round(l2norm(jax.random.normal(k2, (m - n, dim), dtype=jnp.float32)))
    inputs_row = jnp.concatenate([inputs_col, extra], axis=0)          # memory-bank style

    targets_col = jnp.array([0, 0, 1, 1, 2, 2, 3, 3], dtype=jnp.int32)
    targets_row = jnp.concatenate(
        [targets_col, jnp.array([0, 1, 2, 3, 0, 1, 2, 3], dtype=jnp.int32)])
    reward_labels = targets_col
    reward_baseline = 0.0   # unused by the forward pass

    loss = reward_triplet_loss(inputs_col, targets_col, inputs_row, targets_row,
                               reward_labels, reward_baseline,
                               margin=0.1, num_bins=1600)
    loss = jax.block_until_ready(loss)

    ref = _reference_loss(inputs_col, targets_col, inputs_row, targets_row,
                          reward_labels, margin=0.1, num_bins=1600)
    assert np.isfinite(float(loss)), "kernel produced non-finite loss"
    assert abs(float(loss) - ref) < 1e-2 * (1.0 + abs(ref)), (float(loss), ref)

    print("KERNEL_OK")
</pallas_src>

<mosaic_0001>
module attributes {stable_mosaic.version = 11 : i64} {
  func.func @_loss_kernel(%arg0: i32, %arg1: memref<8x32xbf16, #tpu.memory_space<vmem>>, %arg2: memref<16x32xbf16, #tpu.memory_space<vmem>>, %arg3: memref<1x8xi32, #tpu.memory_space<vmem>>, %arg4: memref<16x1xi32, #tpu.memory_space<vmem>>, %arg5: memref<1x8xf32, #tpu.memory_space<vmem>>) attributes {dimension_semantics = [#tpu.dimension_semantics<parallel>], iteration_bounds = array<i64: 1>, scalar_prefetch = 0 : i64, scratch_operands = 0 : i64, tpu.core_type = #tpu.core_type<tc>, window_params = [{transform_indices = @transform_0, window_bounds = array<i64: 8, 32>}, {pipeline_mode = #tpu.pipeline_mode<synchronous>, transform_indices = @transform_1, window_bounds = array<i64: 16, 32>}, {transform_indices = @transform_2, window_bounds = array<i64: 1, 8>}, {pipeline_mode = #tpu.pipeline_mode<synchronous>, transform_indices = @transform_3, window_bounds = array<i64: 16, 1>}, {transform_indices = @transform_4, window_bounds = array<i64: 1, 8>}]} {
    %c0 = arith.constant 0 : index
    %c0_0 = arith.constant 0 : index
    %0 = vector.load %arg2[%c0, %c0_0] : memref<16x32xbf16, #tpu.memory_space<vmem>>, vector<16x32xbf16>
    %c0_1 = arith.constant 0 : index
    %c0_2 = arith.constant 0 : index
    %1 = vector.load %arg1[%c0_1, %c0_2] : memref<8x32xbf16, #tpu.memory_space<vmem>>, vector<8x32xbf16>
    %cst = arith.constant dense<0.000000e+00> : vector<16x8xf32>
    %2 = tpu.matmul %0, %1, %cst {dimension_numbers = #tpu.dot_dimension_numbers<[1], [1], [0], [0], [0, 0, 1, 0], [], []>} : vector<16x32xbf16>, vector<8x32xbf16>, vector<16x8xf32> -> vector<16x8xf32>
    %c0_3 = arith.constant 0 : index
    %c0_4 = arith.constant 0 : index
    %3 = vector.load %arg3[%c0_3, %c0_4] : memref<1x8xi32, #tpu.memory_space<vmem>>, vector<1x8xi32>
    %c0_5 = arith.constant 0 : index
    %c0_6 = arith.constant 0 : index
    %4 = vector.load %arg4[%c0_5, %c0_6] : memref<16x1xi32, #tpu.memory_space<vmem>>, vector<16x1xi32>
    %5 = vector.broadcast %4 : vector<16x1xi32> to vector<16x8xi32>
    %6 = vector.broadcast %3 : vector<1x8xi32> to vector<16x8xi32>
    %7 = arith.cmpi eq, %5, %6 : vector<16x8xi32>
    %8 = tpu.iota {dimensions = array<i32: 0>} : vector<16x8xi32>
    %9 = tpu.iota {dimensions = array<i32: 1>} : vector<16x8xi32>
    %c8_i32 = arith.constant 8 : i32
    %10 = arith.muli %arg0, %c8_i32 : i32
    %11 = vector.broadcast %10 : i32 to vector<16x8xi32>
    %12 = arith.addi %9, %11 : vector<16x8xi32>
    %13 = arith.cmpi eq, %8, %12 : vector<16x8xi32>
    %cst_7 = arith.constant dense<true> : vector<16x8xi1>
    %14 = arith.xori %13, %cst_7 : vector<16x8xi1>
    %15 = arith.andi %7, %14 : vector<16x8xi1>
    %cst_8 = arith.constant dense<true> : vector<16x8xi1>
    %16 = arith.xori %7, %cst_8 : vector<16x8xi1>
    %cst_9 = arith.constant -1.000000e+30 : f32
    %17 = vector.broadcast %cst_9 : f32 to vector<16x8xf32>
    %18 = arith.select %16, %2, %17 : vector<16x8xi1>, vector<16x8xf32>
    %cst_10 = arith.constant dense<0xFF800000> : vector<8xf32>
    %19 = vector.multi_reduction <maximumf>, %18, %cst_10 [0] : vector<16x8xf32> to vector<8xf32>
    %20 = vector.shape_cast %19 : vector<8xf32> to vector<1x8xf32>
    %cst_11 = arith.constant -1.000000e+30 : f32
    %21 = vector.broadcast %cst_11 : f32 to vector<16x8xf32>
    %22 = arith.select %15, %2, %21 : vector<16x8xi1>, vector<16x8xf32>
    %cst_12 = arith.constant dense<0xFF800000> : vector<8xf32>
    %23 = vector.multi_reduction <maximumf>, %22, %cst_12 [0] : vector<16x8xf32> to vector<8xf32>
    %24 = vector.shape_cast %23 : vector<8xf32> to vector<1x8xf32>
    %cst_13 = arith.constant 1.000000e-01 : f32
    %25 = vector.broadcast %cst_13 : f32 to vector<1x8xf32>
    %26 = arith.addf %20, %25 : vector<1x8xf32>
    %27 = vector.broadcast %26 : vector<1x8xf32> to vector<16x8xf32>
    %28 = arith.cmpf olt, %2, %27 : vector<16x8xf32>
    %29 = arith.andi %15, %28 : vector<16x8xi1>
    %cst_14 = arith.constant 1.000000e+00 : f32
    %30 = vector.broadcast %cst_14 : f32 to vector<16x8xf32>
    %31 = arith.subf %30, %2 : vector<16x8xf32>
    %cst_15 = arith.constant 0.000000e+00 : f32
    %32 = vector.broadcast %cst_15 : f32 to vector<16x8xf32>
    %33 = arith.select %29, %31, %32 : vector<16x8xi1>, vector<16x8xf32>
    %cst_16 = arith.constant dense<0.000000e+00> : vector<8xf32>
    %34 = vector.multi_reduction <add>, %33, %cst_16 [0] : vector<16x8xf32> to vector<8xf32>
    %35 = vector.shape_cast %34 : vector<8xf32> to vector<1x8xf32>
    %cst_17 = arith.constant 6.000000e-01 : f32
    %36 = vector.broadcast %cst_17 : f32 to vector<1x8xf32>
    %37 = arith.maximumf %36, %24 : vector<1x8xf32>
    %cst_18 = arith.constant 1.000000e-01 : f32
    %38 = vector.broadcast %cst_18 : f32 to vector<1x8xf32>
    %39 = arith.subf %37, %38 : vector<1x8xf32>
    %40 = vector.broadcast %39 : vector<1x8xf32> to vector<16x8xf32>
    %41 = arith.cmpf ogt, %2, %40 : vector<16x8xf32>
    %42 = arith.andi %16, %41 : vector<16x8xi1>
    %cst_19 = arith.constant 0.000000e+00 : f32
    %43 = vector.broadcast %cst_19 : f32 to vector<16x8xf32>
    %44 = arith.select %42, %2, %43 : vector<16x8xi1>, vector<16x8xf32>
    %cst_20 = arith.constant dense<0.000000e+00> : vector<8xf32>
    %45 = vector.multi_reduction <add>, %44, %cst_20 [0] : vector<16x8xf32> to vector<8xf32>
    %46 = vector.shape_cast %45 : vector<8xf32> to vector<1x8xf32>
    %cst_21 = arith.constant 1.000000e+00 : f32
    %cst_22 = arith.constant 0.000000e+00 : f32
    %47 = vector.broadcast %cst_21 : f32 to vector<16x8xf32>
    %48 = vector.broadcast %cst_22 : f32 to vector<16x8xf32>
    %49 = arith.select %15, %47, %48 : vector<16x8xi1>, vector<16x8xf32>
    %cst_23 = arith.constant dense<0.000000e+00> : vector<8xf32>
    %50 = vector.multi_reduction <add>, %49, %cst_23 [0] : vector<16x8xf32> to vector<8xf32>
    %51 = vector.shape_cast %50 : vector<8xf32> to vector<1x8xf32>
    %cst_24 = arith.constant 0.000000e+00 : f32
    %52 = vector.broadcast %cst_24 : f32 to vector<1x8xf32>
    %53 = arith.cmpf ogt, %51, %52 : vector<1x8xf32>
    %54 = arith.addf %35, %46 : vector<1x8xf32>
    %cst_25 = arith.constant 0.000000e+00 : f32
    %55 = vector.broadcast %cst_25 : f32 to vector<1x8xf32>
    %56 = arith.select %53, %54, %55 : vector<1x8xi1>, vector<1x8xf32>
    %c0_26 = arith.constant 0 : index
    %c0_27 = arith.constant 0 : index
    %57 = vector.load %arg5[%c0_26, %c0_27] : memref<1x8xf32, #tpu.memory_space<vmem>>, vector<1x8xf32>
    tpu.vector_store %arg5[%c0_26, %c0_27], %56 {strides = array<i32>} : memref<1x8xf32, #tpu.memory_space<vmem>>, vector<1x8xf32>,
    return
  }
  func.func @transform_0(%arg0: i32) -> (i32, i32) {
    %c0_i32 = arith.constant 0 : i32
    %c0_i32_0 = arith.constant 0 : i32
    return %arg0, %c0_i32 : i32, i32
  }
  func.func @transform_1(%arg0: i32) -> (i32, i32) {
    %c0_i32 = arith.constant 0 : i32
    %c0_i32_0 = arith.constant 0 : i32
    %c0_i32_1 = arith.constant 0 : i32
    return %c0_i32, %c0_i32_0 : i32, i32
  }
  func.func @transform_2(%arg0: i32) -> (i32, i32) {
    %c0_i32 = arith.constant 0 : i32
    %c0_i32_0 = arith.constant 0 : i32
    return %c0_i32, %arg0 : i32, i32
  }
  func.func @transform_3(%arg0: i32) -> (i32, i32) {
    %c0_i32 = arith.constant 0 : i32
    %c0_i32_0 = arith.constant 0 : i32
    %c0_i32_1 = arith.constant 0 : i32
    return %c0_i32, %c0_i32_0 : i32, i32
  }
  func.func @transform_4(%arg0: i32) -> (i32, i32) {
    %c0_i32 = arith.constant 0 : i32
    %c0_i32_0 = arith.constant 0 : i32
    return %c0_i32, %arg0 : i32, i32
  }
}

</mosaic_0001>

<llo_original>
// kernel: tpu_custom_call.1
$region0: #{tpu_custom_call.1}
  #allocation0 [shape = 'u32[]', space=smem, size = 0x4, offset = 0x4, fixed_abs, tag = 'smem constant byte address 0x4 - core index']
  #allocation1 [shape = 'u32[144,128]{1,0:T(1,128)}', space=vmem, size = 0x12000, scoped, tag = 'internal scratch']
  %s0 = inlined_call_operand.vmem [shape: bf16[8,32], index: 0, kind: input, shape index: {}]
  %s1 = inlined_call_operand.vmem [shape: bf16[16,32], index: 1, kind: input, shape index: {}]
  %s2 = inlined_call_operand.vmem [shape: s32[1,8], index: 2, kind: input, shape index: {}]
  %s3 = inlined_call_operand.vmem [shape: s32[16,1], index: 3, kind: input, shape index: {}]
  %s4 = inlined_call_operand.hbm [shape: f32[1,8], index: 4, kind: output, shape index: {}]
  %s5 = sld [smem:[#allocation0]]
  $region26: #{tpu_custom_call.1} parent=0
    _
  %s7 = ssub.s32 1, %s5
  %s8 = scalar_select 0, %s7, %s5
  $region1: #{tpu_custom_call.1} parent=0
    #allocation2 [shape = 'u8[512]{0}', space=vmem, size = 0x400, scoped, tag = 'output window, operand 0, single buffered']
    #allocation3 [shape = 's32[1]{0}', space=sflag, size = 0x4, scoped, tag = 'scoped memory for tpu_custom_call.1']
    %9 = vsyncpa [#allocation3], 0
    // Predicated region
    $region2: #{tpu_custom_call.1} parent=1 // pred_check
      _
    $region3: #{tpu_custom_call.1} parent=1 // pred_check_branch
      %11 = sbr.rel (0) target = $region5
    $region4: #{tpu_custom_call.1} parent=1 // pred_region
      _
    $region5: #{tpu_custom_call.1} parent=1 // pred_fallthru
      _
    // Predicated region
    $region6: #{tpu_custom_call.1} parent=1 // pred_check
      _
    $region7: #{tpu_custom_call.1} parent=1 // pred_check_branch
      %13 = sbr.rel (0) target = $region9
    $region8: #{tpu_custom_call.1} parent=1 // pred_region
      _
    $region9: #{tpu_custom_call.1} parent=1 // pred_fallthru
      _
    // Predicated region
    $region10: #{tpu_custom_call.1} parent=1 // pred_check
      _
    $region11: #{tpu_custom_call.1} parent=1 // pred_check_branch
      %15 = sbr.rel (0) target = $region13
    $region12: #{tpu_custom_call.1} parent=1 // pred_region
      _
    $region13: #{tpu_custom_call.1} parent=1 // pred_fallthru
      _
    // Predicated region
    $region14: #{tpu_custom_call.1} parent=1 // pred_check
      _
    $region15: #{tpu_custom_call.1} parent=1 // pred_check_branch
      %17 = sbr.rel (0) target = $region17
    $region16: #{tpu_custom_call.1} parent=1 // pred_region
      _
    $region17: #{tpu_custom_call.1} parent=1 // pred_fallthru
      _
    %v19 = vld [vmem:[%s1] sm:$0xf]
    %v20 = vld [vmem:[%s1 + $0x4] sm:$0xf]
    %v21 = vld [vmem:[%s0] sm:$0xf]
    %v24 = vunpack.c.l.b16 %v19
    %v25 = vunpack.c.l.b16 %v20
    %v26 = vpack.c.b16 %v25, %v24
    %vm27 = vcmask 261120
    %v29 = vsel %vm27, %v26, 0
    %v32 = vsel %vm27, %v21, 0
    %34 = vmatprep.subr.bf16.mxu0 0
    %35 = vmatpush1.bf16.xpose.msra.mxu0 %v32
    %36 = vmatprep.subr.bf16.mxu0 0
    %37 = vmatpush1.bf16.xpose.msra.mxu0 0
    %38 = vmatprep.subr.bf16.mxu0 0
    %39 = vmatpush1.bf16.xpose.msra.mxu0 0
    %40 = vmatprep.subr.bf16.mxu0 0
    %41 = vmatpush1.bf16.xpose.msra.mxu0 0
    %42 = vmatprep.subr.bf16.mxu0 0
    %43 = vmatpush1.bf16.xpose.msra.mxu0 0
    %44 = vmatprep.subr.bf16.mxu0 0
    %45 = vmatpush1.bf16.xpose.msra.mxu0 0
    %46 = vmatprep.subr.bf16.mxu0 0
    %47 = vmatpush1.bf16.xpose.msra.mxu0 0
    %48 = vmatprep.subr.bf16.mxu0 0
    %49 = vmatpush1.bf16.xpose.msra.mxu0 0
    %50 = vmatprep.subr.bf16.mxu0 0
    %51 = vmatpush1.bf16.xpose.msra.mxu0 0
    %52 = vmatprep.subr.bf16.mxu0 0
    %53 = vmatpush1.bf16.xpose.msra.mxu0 0
    %54 = vmatprep.subr.bf16.mxu0 0
    %55 = vmatpush1.bf16.xpose.msra.mxu0 0
    %56 = vmatprep.subr.bf16.mxu0 0
    %57 = vmatpush1.bf16.xpose.msra.mxu0 0
    %58 = vmatprep.subr.bf16.mxu0 0
    %59 = vmatpush1.bf16.xpose.msra.mxu0 0
    %60 = vmatprep.subr.bf16.mxu0 0
    %61 = vmatpush1.bf16.xpose.msra.mxu0 0
    %62 = vmatprep.subr.bf16.mxu0 0
    %63 = vmatpush1.bf16.xpose.msra.mxu0 0
    %64 = vmatprep.subr.bf16.mxu0 0
    %65 = vmatpush1.bf16.xpose.msra.mxu0 0
    %66 = vmatprep.mubr.bf16.mxu0 0
    %67 = vmatmul.mubr.bf16.gmra.mrb[0].mxu0 %v29
    %v68 = vpop.f32.mrb[0].mxu0
    %v69 = vadd.f32 0.0, %v68
    %v70 = vpop.f32.mrb[0].mxu0
    %v71 = vpop.f32.mrb[0].mxu0
    %v72 = vadd.f32 0.0, %v71
    %v73 = vpop.f32.mrb[0].mxu0
    %74 = vdwg.mxu0
    %v75 = vld [vmem:[%s2] sm:$0x1]
    %v76 = vld [vmem:[%s3] sm:$0xff]
    %v77 = vld [vmem:[%s3 + $0x8] sm:$0xff]
    %78 = vset.pattern.permute.xlu0 0
    %79 = vperm.xlu0 %78, %v76
    %v80 = vpop.permute.xlu0 %79
    %81 = vset.pattern.permute.xlu0 0
    %82 = vperm.xlu0 %81, %v77
    %v83 = vpop.permute.xlu0 %82
    %v84 = vlaneseq
    %v85 = vshrl.u32 %v84, 7
    %v86 = vsub.s32 0, %v85
    %v87 = vrot.slane %v75, %v86
    %vm88 = vcmp.eq.s32.totalorder %v80, %v87
    %vm89 = vcmp.eq.s32.totalorder %v83, %v87
    %v90 = vlaneseq
    %v91 = vshrl.u32 %v90, 7
    %v92 = vadd.s32 %v91, 8
    %v93 = vlaneseq
    %v94 = vand.u32 %v93, 127
    %s95 = smul.u32 0, 8
    %v96 = vstv %s95
    %v97 = vadd.s32 %v94, %v96
    %vm98 = vcmp.eq.s32.totalorder %v91, %v97
    %vm99 = vcmp.eq.s32.totalorder %v92, %v97
    %vm100 = vmxor %vm98, 1
    %vm101 = vmxor %vm99, 1
    %vm102 = vmand %vm88, %vm100
    %vm103 = vmand %vm89, %vm101
    %vm104 = vmxor %vm88, 1
    %vm105 = vmxor %vm89, 1
    %v106 = vsel %vm104, %v69, -1e+30
    %v107 = vsel %vm105, %v72, -1e+30
    %vm108 = vcmask 64512
    %v109 = vsel %vm108, %v106, -inf
    %v110 = vsel %vm108, %v107, -inf
    %v111 = vmax.f32 %v109, %v110
    %v112 = vrot.slane %v111, 4
    %v113 = vmax.f32 %v111, %v112
    %v114 = vrot.slane %v113, 2
    %v115 = vmax.f32 %v113, %v114
    %v116 = vrot.slane %v115, 1
    %v117 = vmax.f32 %v115, %v116
    %v118 = vsel %vm102, %v69, -1e+30
    %v119 = vsel %vm103, %v72, -1e+30
    %v120 = vsel %vm108, %v118, -inf
    %v121 = vsel %vm108, %v119, -inf
    %v122 = vmax.f32 %v120, %v121
    %v123 = vrot.slane %v122, 4
    %v124 = vmax.f32 %v122, %v123
    %v125 = vrot.slane %v124, 2
    %v126 = vmax.f32 %v124, %v125
    %v127 = vrot.slane %v126, 1
    %v128 = vmax.f32 %v126, %v127
    %v129 = vadd.f32 %v117, 0.1
    %vm130 = vcmp.lt.f32.partialorder %v69, %v129
    %vm131 = vcmp.lt.f32.partialorder %v72, %v129
    %vm132 = vmand %vm102, %vm130
    %vm133 = vmand %vm103, %vm131
    %v134 = vsub.f32 1.0, %v69
    %v135 = vsub.f32 1.0, %v72
    %v136 = vsel %vm132, %v134, 0.0
    %v137 = vsel %vm133, %v135, 0.0
    %v138 = vsel %vm108, %v136, 0.0
    %v139 = vsel %vm108, %v137, 0.0
    %v140 = vadd.f32 %v138, %v139
    %v141 = vrot.slane %v140, 4
    %v142 = vadd.f32 %v140, %v141
    %v143 = vrot.slane %v142, 2
    %v144 = vadd.f32 %v142, %v143
    %v145 = vrot.slane %v144, 1
    %v146 = vadd.f32 %v144, %v145
    %v147 = vmax.f32 %v128, 0.6
    %v148 = vsub.f32 %v147, 0.1
    %vm149 = vcmp.gt.f32.partialorder %v69, %v148
    %vm150 = vcmp.gt.f32.partialorder %v72, %v148
    %vm151 = vmand %vm104, %vm149
    %vm152 = vmand %vm105, %vm150
    %v153 = vsel %vm151, %v69, 0.0
    %v154 = vsel %vm152, %v72, 0.0
    %v155 = vsel %vm108, %v153, 0.0
    %v156 = vsel %vm108, %v154, 0.0
    %v157 = vadd.f32 %v155, %v156
    %v158 = vrot.slane %v157, 4
    %v159 = vadd.f32 %v157, %v158
    %v160 = vrot.slane %v159, 2
    %v161 = vadd.f32 %v159, %v160
    %v162 = vrot.slane %v161, 1
    %v163 = vadd.f32 %v161, %v162
    %v164 = vsel %vm102, 1.0, 0.0
    %v165 = vsel %vm103, 1.0, 0.0
    %v166 = vsel %vm108, %v164, 0.0
    %v167 = vsel %vm108, %v165, 0.0
    %v168 = vadd.f32 %v166, %v167
    %v169 = vrot.slane %v168, 4
    %v170 = vadd.f32 %v168, %v169
    %v171 = vrot.slane %v170, 2
    %v172 = vadd.f32 %v170, %v171
    %v173 = vrot.slane %v172, 1
    %v174 = vadd.f32 %v172, %v173
    %vm175 = vcmp.gt.f32.partialorder %v174, 0.0
    %v176 = vadd.f32 %v146, %v163
    %v177 = vsel %vm175, %v176, 0.0
    %vm178 = vcmask 57344
    %179 = vst.msk [vmem:[#allocation2] sm:$0x1] %vm178, %v177
    // Predicated region
    $region18: #{tpu_custom_call.1} parent=1 // pred_check
      _
    $region19: #{tpu_custom_call.1} parent=1 // pred_check_branch
      %181 = sbr.rel (0) target = $region21
    $region20: #{tpu_custom_call.1} parent=1 // pred_region
      %s183 = ssub.s32 16, 16
      %184 = vsyncadd [#allocation3], %s183
      %s186 = sshll.u32 [#allocation2], 4
      %s187 = int_to_ptr.vmem [resolvable:$true] %s186
      %189 = dma.vmem_to_hbm [thread:$0]  %s187, 16, %s4, [#allocation3]
    $region21: #{tpu_custom_call.1} parent=1 // pred_fallthru
      _
    // Predicated region
    $region22: #{tpu_custom_call.1} parent=1 // pred_check
      _
    $region23: #{tpu_custom_call.1} parent=1 // pred_check_branch
      %191 = sbr.rel (0) target = $region25
    $region24: #{tpu_custom_call.1} parent=1 // pred_region
      %192 = dma.done [#allocation3], 16
    $region25: #{tpu_custom_call.1} parent=1 // pred_fallthru
      _
    %193 = vsyncpa [#allocation3], 1

</llo_original>
